<compile_context>
chip_gen: v6e
topology: v6e:2x2x1
jax: 0.10.0
libtpu: 0.0.40
codegen_flags: <defaults>
</compile_context>

<pallas_src>
import functools

import jax
import jax.numpy as jnp
from jax.experimental import pallas as pl
from jax.experimental.pallas import tpu as pltpu


def _round_up(x, m):
    return ((x + m - 1) // m) * m


def _cdiv(a, b):
    return -(-a // b)


def _mean_net_kernel(n_linear, compute_dtype, tanh_dtype, *refs):
    # refs = (obs_ref, W0, b0, W1, b1, ..., W_out, b_out, mean_ref)
    obs_ref = refs[0]
    param_refs = refs[1:1 + 2 * n_linear]
    mean_ref = refs[1 + 2 * n_linear]

    # obs arrives f32 (unpadded); cast to the MXU dtype in-kernel so the
    # wrapper never materializes a padded/cast copy in HBM.
    x = obs_ref[...].astype(compute_dtype)
    for li in range(n_linear):
        w = param_refs[2 * li][...]                     # (in, out)  compute dtype
        b = param_refs[2 * li + 1][...]                 # (1, out)   f32
        y = jnp.dot(x, w, preferred_element_type=jnp.float32) + b   # f32 accum
        if li < n_linear - 1:
            # Hidden layer: Tanh.  tanh_dtype is bf16 on v6e/v7x (bf16 EUP),
            # f32 on v5e/older.  Next-layer MXU operand is compute_dtype.
            x = jnp.tanh(y.astype(tanh_dtype)).astype(compute_dtype)
        else:
            x = y                                       # output layer: Identity (f32)
    mean_ref[...] = x.astype(mean_ref.dtype)


def mlp_policy_forward(obs, weights, biases, logstd, *, block_b=None,
                       compute_dtype=jnp.bfloat16, tanh_dtype=None):
    """MLPPolicy (continuous) forward.

    Args:
      obs:     (B, ob_dim) float32
      weights: list of (in, out) float32 arrays, length n_layers + 1
      biases:  list of (out,)   float32 arrays, length n_layers + 1
      logstd:  (ac_dim,) float32
      block_b: optional batch tile (rounded up to a multiple of 16)
      compute_dtype: dtype fed to the MXU (bf16 by default; accumulation is f32)
      tanh_dtype: dtype of the hidden Tanh; default is auto (bf16 on v6e/v7x,
        f32 on v5e and older generations).

    Returns:
      batch_mean:       (B, ac_dim) float32
      batch_scale_tril: (B, ac_dim, ac_dim) float32 (lazy broadcast, built in JAX)
    """
    B, ob_dim = obs.shape
    ac_dim = int(logstd.shape[-1])
    n_linear = len(weights)
    compute_dtype = jnp.dtype(compute_dtype)

    # ---- tanh dtype: bf16 EUP on v6e/v7x, f32 on v5e and older ---------------
    if tanh_dtype is None:
        kind = jax.devices()[0].device_kind.lower()
        old_gen = any(tag in kind for tag in ("v2", "v3", "v4", "v5"))
        if old_gen or compute_dtype == jnp.dtype(jnp.float32):
            tanh_dtype = jnp.float32
        else:
            tanh_dtype = compute_dtype
    tanh_dtype = jnp.dtype(tanh_dtype)

    # ---- batch tiling (no padding: the last block may be partial) ------------
    if block_b is None:
        cap = 1024                             # per-step VMEM stays tiny; amortize ~0.35us/step
        min_tiles = 2 if B >= 32 else 1        # >= 2 grid steps so both v7x TCs get work
        n_tiles = max(min_tiles, _cdiv(B, cap))
        block_b = min(cap, _round_up(_cdiv(B, n_tiles), 16))   # 16-aligned (bf16 packing)
    else:
        block_b = _round_up(int(block_b), 16)
    grid = (_cdiv(B, block_b),)

    # ---- parameters: weights in MXU dtype, biases as f32 (1, out) rows -------
    w_c = [w.astype(compute_dtype) for w in weights]
    b_c = [b.astype(jnp.float32).reshape(1, -1) for b in biases]
    obs_f32 = obs.astype(jnp.float32)
    flat_params = [p for pair in zip(w_c, b_c) for p in pair]

    # ---- explicit VMEM budget (sized to also fit v7x's 64 MiB VMEM) ----------
    param_bytes = (sum(int(w.size) * compute_dtype.itemsize for w in w_c)
                   + sum(int(b.size) * 4 for b in b_c))
    widest = max([ob_dim, ac_dim] + [int(w.shape[1]) for w in w_c])
    act_bytes = 2 * block_b * (ob_dim + ac_dim) * 4      # double-buffered in/out blocks
    live_bytes = 4 * block_b * widest * 4                # rough in-kernel f32 activations
    vmem_est = 2 * param_bytes + act_bytes + live_bytes  # pessimistic: 2x-buffered params
    if vmem_est > 48 * 2**20:
        # TODO(synk): for very wide hidden layers add a K-tiling "arbitrary" grid
        # axis with an f32 accumulator instead of keeping every layer resident
        # (required to fit v7x's 64 MiB VMEM).
        raise NotImplementedError(
            f"resident-parameter kernel needs ~{vmem_est >> 20} MiB VMEM; add K-tiling")
    vmem_limit = int(min(max(2 * vmem_est, 32 * 2**20), 48 * 2**20))

    # ---- cost estimate --------------------------------------------------------
    flops = 2 * B * sum(int(w.shape[0]) * int(w.shape[1]) for w in weights)
    transcendentals = B * sum(int(w.shape[1]) for w in weights[:-1])   # hidden tanh
    bytes_accessed = int(B * ob_dim * 4 + param_bytes + B * ac_dim * 4)

    kernel = functools.partial(_mean_net_kernel, n_linear, compute_dtype, tanh_dtype)
    obs_spec = pl.BlockSpec((block_b, ob_dim), lambda i: (i, 0))
    out_spec = pl.BlockSpec((block_b, ac_dim), lambda i: (i, 0))
    out_shape = jax.ShapeDtypeStruct((B, ac_dim), jnp.float32)

    def build(single_buffer_params):
        in_specs = [obs_spec]
        for w, b in zip(w_c, b_c):
            if single_buffer_params:
                # Constant-index resident params: DMA once, single VMEM buffer.
                in_specs.append(pl.BlockSpec(w.shape, lambda i: (0, 0),
                                             pipeline_mode=pl.Buffered(1)))
                in_specs.append(pl.BlockSpec(b.shape, lambda i: (0, 0),
                                             pipeline_mode=pl.Buffered(1)))
            else:
                in_specs.append(pl.BlockSpec(w.shape, lambda i: (0, 0)))
                in_specs.append(pl.BlockSpec(b.shape, lambda i: (0, 0)))
        return pl.pallas_call(
            kernel,
            grid=grid,
            in_specs=in_specs,
            out_specs=out_spec,
            out_shape=out_shape,
            compiler_params=pltpu.CompilerParams(
                dimension_semantics=("parallel",),
                vmem_limit_bytes=vmem_limit),
            cost_estimate=pl.CostEstimate(
                flops=flops,
                transcendentals=transcendentals,
                bytes_accessed=bytes_accessed),
        )

    try:
        batch_mean = build(True)(obs_f32, *flat_params)
    except Exception:
        # This Pallas build does not accept pipeline_mode=pl.Buffered(1);
        # fall back to default (params still fetched once, just 2x VMEM).
        batch_mean = build(False)(obs_f32, *flat_params)

    # scale_tril = diag(exp(logstd)); the B-way broadcast is free/lazy in XLA.
    scale_tril = jnp.diag(jnp.exp(logstd.astype(jnp.float32)))
    batch_scale_tril = jnp.broadcast_to(scale_tril[None], (B, ac_dim, ac_dim))
    # TODO(synk): torch.distributions.MultivariateNormal object construction has
    # no Pallas equivalent; we return its parameters (mean, scale_tril).
    return batch_mean, batch_scale_tril


def init_params(key, ob_dim, ac_dim, n_layers, size):
    """Deterministic init mimicking torch.nn.Linear default (uniform +-1/sqrt(fan_in))."""
    dims = [ob_dim] + [size] * n_layers + [ac_dim]
    weights, biases = [], []
    for i in range(len(dims) - 1):
        fan_in, fan_out = dims[i], dims[i + 1]
        key, kw, kb = jax.random.split(key, 3)
        bound = 1.0 / (fan_in ** 0.5)
        weights.append(jax.random.uniform(
            kw, (fan_in, fan_out), jnp.float32, -bound, bound))
        biases.append(jax.random.uniform(
            kb, (fan_out,), jnp.float32, -bound, bound))
    logstd = jnp.zeros((ac_dim,), jnp.float32)   # nn.Parameter(torch.zeros(ac_dim))
    return weights, biases, logstd


def reference_forward(obs, weights, biases, logstd):
    x = obs
    n_linear = len(weights)
    for i, (w, b) in enumerate(zip(weights, biases)):
        x = x @ w + b
        if i < n_linear - 1:
            x = jnp.tanh(x)
    mean = x
    tril = jnp.diag(jnp.exp(logstd))
    return mean, jnp.broadcast_to(tril[None], (obs.shape[0],) + tril.shape)


if __name__ == "__main__":
    # Small shapes consistent with MLPPolicy: ob_dim=16, ac_dim=4, n_layers=2,
    # size=32, batch=8.
    ob_dim, ac_dim, n_layers, size, batch = 16, 4, 2, 32, 8

    key = jax.random.PRNGKey(0)
    key, k_obs = jax.random.split(key)
    obs = jax.random.normal(k_obs, (batch, ob_dim), jnp.float32)
    weights, biases, logstd = init_params(key, ob_dim, ac_dim, n_layers, size)

    ref_mean, ref_tril = reference_forward(obs, weights, biases, logstd)

    # f32 compute path: tight check against the reference.
    mean_f32, tril_f32 = mlp_policy_forward(
        obs, weights, biases, logstd, compute_dtype=jnp.float32)
    jax.block_until_ready((mean_f32, tril_f32))
    assert mean_f32.shape == (batch, ac_dim)
    assert jnp.allclose(mean_f32, ref_mean, atol=1e-5, rtol=1e-5)
    assert jnp.allclose(tril_f32, ref_tril, atol=1e-6, rtol=1e-6)

    # Default bf16-on-MXU path (f32 accumulation, generation-gated tanh dtype).
    mean_bf, tril_bf = mlp_policy_forward(obs, weights, biases, logstd)
    jax.block_until_ready((mean_bf, tril_bf))
    assert jnp.allclose(mean_bf, ref_mean, atol=5e-2, rtol=5e-2)
    assert jnp.allclose(tril_bf, ref_tril, atol=1e-6, rtol=1e-6)

    # Non-divisible batch: exercises the >=2-step grid and the partial last
    # tile (masked stores, no batch padding in the wrapper).
    key, k_obs2 = jax.random.split(key)
    obs2 = jax.random.normal(k_obs2, (100, ob_dim), jnp.float32)
    ref_mean2, _ = reference_forward(obs2, weights, biases, logstd)
    mean2, _ = mlp_policy_forward(obs2, weights, biases, logstd,
                                  compute_dtype=jnp.float32)
    jax.block_until_ready(mean2)
    assert mean2.shape == (100, ac_dim)
    assert jnp.allclose(mean2, ref_mean2, atol=1e-5, rtol=1e-5)

    print("KERNEL_OK")
</pallas_src>

<mosaic_0001>
module attributes {stable_mosaic.version = 11 : i64} {
  func.func @_mean_net_kernel(%arg0: i32, %arg1: memref<16x16xf32, #tpu.memory_space<vmem>>, %arg2: memref<16x32xf32, #tpu.memory_space<vmem>>, %arg3: memref<1x32xf32, #tpu.memory_space<vmem>>, %arg4: memref<32x32xf32, #tpu.memory_space<vmem>>, %arg5: memref<1x32xf32, #tpu.memory_space<vmem>>, %arg6: memref<32x4xf32, #tpu.memory_space<vmem>>, %arg7: memref<1x4xf32, #tpu.memory_space<vmem>>, %arg8: memref<16x4xf32, #tpu.memory_space<vmem>>) attributes {dimension_semantics = [#tpu.dimension_semantics<parallel>], iteration_bounds = array<i64: 1>, scalar_prefetch = 0 : i64, scratch_operands = 0 : i64, tpu.core_type = #tpu.core_type<tc>, window_params = [{transform_indices = @transform_0, window_bounds = array<i64: 16, 16>}, {pipeline_mode = #tpu.pipeline_mode<synchronous>, transform_indices = @transform_1, window_bounds = array<i64: 16, 32>}, {pipeline_mode = #tpu.pipeline_mode<synchronous>, transform_indices = @transform_2, window_bounds = array<i64: 1, 32>}, {pipeline_mode = #tpu.pipeline_mode<synchronous>, transform_indices = @transform_3, window_bounds = array<i64: 32, 32>}, {pipeline_mode = #tpu.pipeline_mode<synchronous>, transform_indices = @transform_4, window_bounds = array<i64: 1, 32>}, {pipeline_mode = #tpu.pipeline_mode<synchronous>, transform_indices = @transform_5, window_bounds = array<i64: 32, 4>}, {pipeline_mode = #tpu.pipeline_mode<synchronous>, transform_indices = @transform_6, window_bounds = array<i64: 1, 4>}, {transform_indices = @transform_7, window_bounds = array<i64: 16, 4>}]} {
    %c0 = arith.constant 0 : index
    %c0_0 = arith.constant 0 : index
    %0 = vector.load %arg1[%c0, %c0_0] : memref<16x16xf32, #tpu.memory_space<vmem>>, vector<16x16xf32>
    %c0_1 = arith.constant 0 : index
    %c0_2 = arith.constant 0 : index
    %1 = vector.load %arg2[%c0_1, %c0_2] : memref<16x32xf32, #tpu.memory_space<vmem>>, vector<16x32xf32>
    %c0_3 = arith.constant 0 : index
    %c0_4 = arith.constant 0 : index
    %2 = vector.load %arg3[%c0_3, %c0_4] : memref<1x32xf32, #tpu.memory_space<vmem>>, vector<1x32xf32>
    %cst = arith.constant dense<0.000000e+00> : vector<16x32xf32>
    %3 = tpu.matmul %0, %1, %cst {dimension_numbers = #tpu.dot_dimension_numbers<[1], [0], [0], [1], [0, 0, 1, 1], [], []>} : vector<16x16xf32>, vector<16x32xf32>, vector<16x32xf32> -> vector<16x32xf32>
    %4 = vector.broadcast %2 : vector<1x32xf32> to vector<16x32xf32>
    %5 = arith.addf %3, %4 : vector<16x32xf32>
    %6 = math.tanh %5 : vector<16x32xf32>
    %c0_5 = arith.constant 0 : index
    %c0_6 = arith.constant 0 : index
    %7 = vector.load %arg4[%c0_5, %c0_6] : memref<32x32xf32, #tpu.memory_space<vmem>>, vector<32x32xf32>
    %c0_7 = arith.constant 0 : index
    %c0_8 = arith.constant 0 : index
    %8 = vector.load %arg5[%c0_7, %c0_8] : memref<1x32xf32, #tpu.memory_space<vmem>>, vector<1x32xf32>
    %cst_9 = arith.constant dense<0.000000e+00> : vector<16x32xf32>
    %9 = tpu.matmul %6, %7, %cst_9 {dimension_numbers = #tpu.dot_dimension_numbers<[1], [0], [0], [1], [0, 0, 1, 1], [], []>} : vector<16x32xf32>, vector<32x32xf32>, vector<16x32xf32> -> vector<16x32xf32>
    %10 = vector.broadcast %8 : vector<1x32xf32> to vector<16x32xf32>
    %11 = arith.addf %9, %10 : vector<16x32xf32>
    %12 = math.tanh %11 : vector<16x32xf32>
    %c0_10 = arith.constant 0 : index
    %c0_11 = arith.constant 0 : index
    %13 = vector.load %arg6[%c0_10, %c0_11] : memref<32x4xf32, #tpu.memory_space<vmem>>, vector<32x4xf32>
    %c0_12 = arith.constant 0 : index
    %c0_13 = arith.constant 0 : index
    %14 = vector.load %arg7[%c0_12, %c0_13] : memref<1x4xf32, #tpu.memory_space<vmem>>, vector<1x4xf32>
    %cst_14 = arith.constant dense<0.000000e+00> : vector<16x4xf32>
    %15 = tpu.matmul %12, %13, %cst_14 {dimension_numbers = #tpu.dot_dimension_numbers<[1], [0], [0], [1], [0, 0, 1, 1], [], []>} : vector<16x32xf32>, vector<32x4xf32>, vector<16x4xf32> -> vector<16x4xf32>
    %16 = vector.broadcast %14 : vector<1x4xf32> to vector<16x4xf32>
    %17 = arith.addf %15, %16 : vector<16x4xf32>
    %c0_15 = arith.constant 0 : index
    %c0_16 = arith.constant 0 : index
    %18 = vector.load %arg8[%c0_15, %c0_16] : memref<16x4xf32, #tpu.memory_space<vmem>>, vector<16x4xf32>
    tpu.vector_store %arg8[%c0_15, %c0_16], %17 {strides = array<i32>} : memref<16x4xf32, #tpu.memory_space<vmem>>, vector<16x4xf32>,
    return
  }
  func.func @transform_0(%arg0: i32) -> (i32, i32) {
    %c0_i32 = arith.constant 0 : i32
    %c0_i32_0 = arith.constant 0 : i32
    return %arg0, %c0_i32 : i32, i32
  }
  func.func @transform_1(%arg0: i32) -> (i32, i32) {
    %c0_i32 = arith.constant 0 : i32
    %c0_i32_0 = arith.constant 0 : i32
    %c0_i32_1 = arith.constant 0 : i32
    return %c0_i32, %c0_i32_0 : i32, i32
  }
  func.func @transform_2(%arg0: i32) -> (i32, i32) {
    %c0_i32 = arith.constant 0 : i32
    %c0_i32_0 = arith.constant 0 : i32
    %c0_i32_1 = arith.constant 0 : i32
    return %c0_i32, %c0_i32_0 : i32, i32
  }
  func.func @transform_3(%arg0: i32) -> (i32, i32) {
    %c0_i32 = arith.constant 0 : i32
    %c0_i32_0 = arith.constant 0 : i32
    %c0_i32_1 = arith.constant 0 : i32
    return %c0_i32, %c0_i32_0 : i32, i32
  }
  func.func @transform_4(%arg0: i32) -> (i32, i32) {
    %c0_i32 = arith.constant 0 : i32
    %c0_i32_0 = arith.constant 0 : i32
    %c0_i32_1 = arith.constant 0 : i32
    return %c0_i32, %c0_i32_0 : i32, i32
  }
  func.func @transform_5(%arg0: i32) -> (i32, i32) {
    %c0_i32 = arith.constant 0 : i32
    %c0_i32_0 = arith.constant 0 : i32
    %c0_i32_1 = arith.constant 0 : i32
    return %c0_i32, %c0_i32_0 : i32, i32
  }
  func.func @transform_6(%arg0: i32) -> (i32, i32) {
    %c0_i32 = arith.constant 0 : i32
    %c0_i32_0 = arith.constant 0 : i32
    %c0_i32_1 = arith.constant 0 : i32
    return %c0_i32, %c0_i32_0 : i32, i32
  }
  func.func @transform_7(%arg0: i32) -> (i32, i32) {
    %c0_i32 = arith.constant 0 : i32
    %c0_i32_0 = arith.constant 0 : i32
    return %arg0, %c0_i32 : i32, i32
  }
}

module attributes {stable_mosaic.version = 11 : i64} {
  func.func @_mean_net_kernel(%arg0: i32, %arg1: memref<16x16xf32, #tpu.memory_space<vmem>>, %arg2: memref<16x32xf32, #tpu.memory_space<vmem>>, %arg3: memref<1x32xf32, #tpu.memory_space<vmem>>, %arg4: memref<32x32xf32, #tpu.memory_space<vmem>>, %arg5: memref<1x32xf32, #tpu.memory_space<vmem>>, %arg6: memref<32x4xf32, #tpu.memory_space<vmem>>, %arg7: memref<1x4xf32, #tpu.memory_space<vmem>>, %arg8: memref<16x4xf32, #tpu.memory_space<vmem>>) attributes {dimension_semantics = [#tpu.dimension_semantics<parallel>], iteration_bounds = array<i64: 1>, scalar_prefetch = 0 : i64, scratch_operands = 0 : i64, tpu.core_type = #tpu.core_type<tc>, window_params = [{transform_indices = @transform_0, window_bounds = array<i64: 16, 16>}, {pipeline_mode = #tpu.pipeline_mode<synchronous>, transform_indices = @transform_1, window_bounds = array<i64: 16, 32>}, {pipeline_mode = #tpu.pipeline_mode<synchronous>, transform_indices = @transform_2, window_bounds = array<i64: 1, 32>}, {pipeline_mode = #tpu.pipeline_mode<synchronous>, transform_indices = @transform_3, window_bounds = array<i64: 32, 32>}, {pipeline_mode = #tpu.pipeline_mode<synchronous>, transform_indices = @transform_4, window_bounds = array<i64: 1, 32>}, {pipeline_mode = #tpu.pipeline_mode<synchronous>, transform_indices = @transform_5, window_bounds = array<i64: 32, 4>}, {pipeline_mode = #tpu.pipeline_mode<synchronous>, transform_indices = @transform_6, window_bounds = array<i64: 1, 4>}, {transform_indices = @transform_7, window_bounds = array<i64: 16, 4>}]} {
    %c0 = arith.constant 0 : index
    %c0_0 = arith.constant 0 : index
    %0 = vector.load %arg1[%c0, %c0_0] : memref<16x16xf32, #tpu.memory_space<vmem>>, vector<16x16xf32>
    %c0_1 = arith.constant 0 : index
    %c0_2 = arith.constant 0 : index
    %1 = vector.load %arg2[%c0_1, %c0_2] : memref<16x32xf32, #tpu.memory_space<vmem>>, vector<16x32xf32>
    %c0_3 = arith.constant 0 : index
    %c0_4 = arith.constant 0 : index
    %2 = vector.load %arg3[%c0_3, %c0_4] : memref<1x32xf32, #tpu.memory_space<vmem>>, vector<1x32xf32>
    %cst = arith.constant dense<0.000000e+00> : vector<16x32xf32>
    %3 = tpu.matmul %0, %1, %cst {dimension_numbers = #tpu.dot_dimension_numbers<[1], [0], [0], [1], [0, 0, 1, 1], [], []>} : vector<16x16xf32>, vector<16x32xf32>, vector<16x32xf32> -> vector<16x32xf32>
    %4 = vector.broadcast %2 : vector<1x32xf32> to vector<16x32xf32>
    %5 = arith.addf %3, %4 : vector<16x32xf32>
    %6 = math.tanh %5 : vector<16x32xf32>
    %c0_5 = arith.constant 0 : index
    %c0_6 = arith.constant 0 : index
    %7 = vector.load %arg4[%c0_5, %c0_6] : memref<32x32xf32, #tpu.memory_space<vmem>>, vector<32x32xf32>
    %c0_7 = arith.constant 0 : index
    %c0_8 = arith.constant 0 : index
    %8 = vector.load %arg5[%c0_7, %c0_8] : memref<1x32xf32, #tpu.memory_space<vmem>>, vector<1x32xf32>
    %cst_9 = arith.constant dense<0.000000e+00> : vector<16x32xf32>
    %9 = tpu.matmul %6, %7, %cst_9 {dimension_numbers = #tpu.dot_dimension_numbers<[1], [0], [0], [1], [0, 0, 1, 1], [], []>} : vector<16x32xf32>, vector<32x32xf32>, vector<16x32xf32> -> vector<16x32xf32>
    %10 = vector.broadcast %8 : vector<1x32xf32> to vector<16x32xf32>
    %11 = arith.addf %9, %10 : vector<16x32xf32>
    %12 = math.tanh %11 : vector<16x32xf32>
    %c0_10 = arith.constant 0 : index
    %c0_11 = arith.constant 0 : index
    %13 = vector.load %arg6[%c0_10, %c0_11] : memref<32x4xf32, #tpu.memory_space<vmem>>, vector<32x4xf32>
    %c0_12 = arith.constant 0 : index
    %c0_13 = arith.constant 0 : index
    %14 = vector.load %arg7[%c0_12, %c0_13] : memref<1x4xf32, #tpu.memory_space<vmem>>, vector<1x4xf32>
    %cst_14 = arith.constant dense<0.000000e+00> : vector<16x4xf32>
    %15 = tpu.matmul %12, %13, %cst_14 {dimension_numbers = #tpu.dot_dimension_numbers<[1], [0], [0], [1], [0, 0, 1, 1], [], []>} : vector<16x32xf32>, vector<32x4xf32>, vector<16x4xf32> -> vector<16x4xf32>
    %16 = vector.broadcast %14 : vector<1x4xf32> to vector<16x4xf32>
    %17 = arith.addf %15, %16 : vector<16x4xf32>
    %c0_15 = arith.constant 0 : index
    %c0_16 = arith.constant 0 : index
    %18 = vector.load %arg8[%c0_15, %c0_16] : memref<16x4xf32, #tpu.memory_space<vmem>>, vector<16x4xf32>
    tpu.vector_store %arg8[%c0_15, %c0_16], %17 {strides = array<i32>} : memref<16x4xf32, #tpu.memory_space<vmem>>, vector<16x4xf32>,
    return
  }
  func.func @transform_0(%arg0: i32) -> (i32, i32) {
    %c0_i32 = arith.constant 0 : i32
    %c0_i32_0 = arith.constant 0 : i32
    return %arg0, %c0_i32 : i32, i32
  }
  func.func @transform_1(%arg0: i32) -> (i32, i32) {
    %c0_i32 = arith.constant 0 : i32
    %c0_i32_0 = arith.constant 0 : i32
    %c0_i32_1 = arith.constant 0 : i32
    return %c0_i32, %c0_i32_0 : i32, i32
  }
  func.func @transform_2(%arg0: i32) -> (i32, i32) {
    %c0_i32 = arith.constant 0 : i32
    %c0_i32_0 = arith.constant 0 : i32
    %c0_i32_1 = arith.constant 0 : i32
    return %c0_i32, %c0_i32_0 : i32, i32
  }
  func.func @transform_3(%arg0: i32) -> (i32, i32) {
    %c0_i32 = arith.constant 0 : i32
    %c0_i32_0 = arith.constant 0 : i32
    %c0_i32_1 = arith.constant 0 : i32
    return %c0_i32, %c0_i32_0 : i32, i32
  }
  func.func @transform_4(%arg0: i32) -> (i32, i32) {
    %c0_i32 = arith.constant 0 : i32
    %c0_i32_0 = arith.constant 0 : i32
    %c0_i32_1 = arith.constant 0 : i32
    return %c0_i32, %c0_i32_0 : i32, i32
  }
  func.func @transform_5(%arg0: i32) -> (i32, i32) {
    %c0_i32 = arith.constant 0 : i32
    %c0_i32_0 = arith.constant 0 : i32
    %c0_i32_1 = arith.constant 0 : i32
    return %c0_i32, %c0_i32_0 : i32, i32
  }
  func.func @transform_6(%arg0: i32) -> (i32, i32) {
    %c0_i32 = arith.constant 0 : i32
    %c0_i32_0 = arith.constant 0 : i32
    %c0_i32_1 = arith.constant 0 : i32
    return %c0_i32, %c0_i32_0 : i32, i32
  }
  func.func @transform_7(%arg0: i32) -> (i32, i32) {
    %c0_i32 = arith.constant 0 : i32
    %c0_i32_0 = arith.constant 0 : i32
    return %arg0, %c0_i32 : i32, i32
  }
}

</mosaic_0001>

<llo_original>
// kernel: tpu_custom_call.1
$region0: #{tpu_custom_call.1}
  #allocation0 [shape = 'u32[]', space=smem, size = 0x4, offset = 0x4, fixed_abs, tag = 'smem constant byte address 0x4 - core index']
  #allocation1 [shape = 'u32[144,128]{1,0:T(1,128)}', space=vmem, size = 0x12000, scoped, tag = 'internal scratch']
  %s0 = inlined_call_operand.vmem [shape: f32[8,16], index: 0, kind: input, shape index: {}]
  %s1 = inlined_call_operand.hbm [shape: f32[16,32], index: 1, kind: input, shape index: {}]
  %s2 = inlined_call_operand.vmem [shape: f32[1,32], index: 2, kind: input, shape index: {}]
  %s3 = inlined_call_operand.vmem [shape: f32[32,32], index: 3, kind: input, shape index: {}]
  %s4 = inlined_call_operand.hbm [shape: f32[1,32], index: 4, kind: input, shape index: {}]
  %s5 = inlined_call_operand.vmem [shape: f32[32,4], index: 5, kind: input, shape index: {}]
  %s6 = inlined_call_operand.vmem [shape: f32[1,4], index: 6, kind: input, shape index: {}]
  %s7 = inlined_call_operand.vmem [shape: f32[8,4], index: 7, kind: output, shape index: {}]
  %s8 = sld [smem:[#allocation0]]
  $region80: #{tpu_custom_call.1} parent=0
    _
  %s10 = ssub.s32 1, %s8
  %s11 = scalar_select 0, %s10, %s8
  $region1: #{tpu_custom_call.1} parent=0
    #allocation2 [shape = 'u8[8192]{0}', space=vmem, size = 0x2000, scoped, tag = 'input window, operand 1, single buffered']
    #allocation3 [shape = 's32[1]{0}', space=sflag, size = 0x4, scoped, tag = 'scoped memory for tpu_custom_call.1']
    #allocation4 [shape = 'u8[512]{0}', space=vmem, size = 0x400, scoped, tag = 'input window, operand 4, single buffered']
    #allocation5 [shape = 's32[1]{0}', space=sflag, size = 0x4, scoped, tag = 'scoped memory for tpu_custom_call.1']
    #allocation6 [shape = 'u8[8192]{0}', space=vmem, size = 0x2000, scoped, tag = 'output window, operand 0, single buffered']
    %12 = vsyncpa [#allocation3], 0
    %13 = vsyncpa [#allocation5], 0
    // Predicated region
    $region2: #{tpu_custom_call.1} parent=1 // pred_check
      _
    $region3: #{tpu_custom_call.1} parent=1 // pred_check_branch
      %15 = sbr.rel (0) target = $region5
    $region4: #{tpu_custom_call.1} parent=1 // pred_region
      _
    $region5: #{tpu_custom_call.1} parent=1 // pred_fallthru
      _
    // Predicated region
    $region6: #{tpu_custom_call.1} parent=1 // pred_check
      _
    $region7: #{tpu_custom_call.1} parent=1 // pred_check_branch
      %17 = sbr.rel (0) target = $region9
    $region8: #{tpu_custom_call.1} parent=1 // pred_region
      %s19 = ssub.s32 256, 256
      %20 = vsyncadd [#allocation3], %s19
      %s21 = sshll.u32 [#allocation2], 4
      %s22 = int_to_ptr.vmem [resolvable:$true] %s21
      %27 = dma.hbm_to_vmem [thread:$0]  %s1, 256, %s22, [#allocation3], 128, 128, 8
    $region9: #{tpu_custom_call.1} parent=1 // pred_fallthru
      _
    // Predicated region
    $region10: #{tpu_custom_call.1} parent=1 // pred_check
      _
    $region11: #{tpu_custom_call.1} parent=1 // pred_check_branch
      %29 = sbr.rel (0) target = $region13
    $region12: #{tpu_custom_call.1} parent=1 // pred_region
      _
    $region13: #{tpu_custom_call.1} parent=1 // pred_fallthru
      _
    // Predicated region
    $region14: #{tpu_custom_call.1} parent=1 // pred_check
      _
    $region15: #{tpu_custom_call.1} parent=1 // pred_check_branch
      %31 = sbr.rel (0) target = $region17
    $region16: #{tpu_custom_call.1} parent=1 // pred_region
      _
    $region17: #{tpu_custom_call.1} parent=1 // pred_fallthru
      _
    // Predicated region
    $region18: #{tpu_custom_call.1} parent=1 // pred_check
      _
    $region19: #{tpu_custom_call.1} parent=1 // pred_check_branch
      %33 = sbr.rel (0) target = $region21
    $region20: #{tpu_custom_call.1} parent=1 // pred_region
      %s35 = ssub.s32 16, 16
      %36 = vsyncadd [#allocation5], %s35
      %s38 = sshll.u32 [#allocation4], 4
      %s39 = int_to_ptr.vmem [resolvable:$true] %s38
      %41 = dma.hbm_to_vmem [thread:$0]  %s4, 16, %s39, [#allocation5]
    $region21: #{tpu_custom_call.1} parent=1 // pred_fallthru
      _
    // Predicated region
    $region22: #{tpu_custom_call.1} parent=1 // pred_check
      _
    $region23: #{tpu_custom_call.1} parent=1 // pred_check_branch
      %43 = sbr.rel (0) target = $region25
    $region24: #{tpu_custom_call.1} parent=1 // pred_region
      _
    $region25: #{tpu_custom_call.1} parent=1 // pred_fallthru
      _
    // Predicated region
    $region26: #{tpu_custom_call.1} parent=1 // pred_check
      _
    $region27: #{tpu_custom_call.1} parent=1 // pred_check_branch
      %45 = sbr.rel (0) target = $region29
    $region28: #{tpu_custom_call.1} parent=1 // pred_region
      _
    $region29: #{tpu_custom_call.1} parent=1 // pred_fallthru
      _
    // Predicated region
    $region30: #{tpu_custom_call.1} parent=1 // pred_check
      _
    $region31: #{tpu_custom_call.1} parent=1 // pred_check_branch
      %47 = sbr.rel (0) target = $region33
    $region32: #{tpu_custom_call.1} parent=1 // pred_region
      %48 = dma.done [#allocation3], 256
    $region33: #{tpu_custom_call.1} parent=1 // pred_fallthru
      _
    // Predicated region
    $region34: #{tpu_custom_call.1} parent=1 // pred_check
      _
    $region35: #{tpu_custom_call.1} parent=1 // pred_check_branch
      %50 = sbr.rel (0) target = $region37
    $region36: #{tpu_custom_call.1} parent=1 // pred_region
      %51 = dma.done [#allocation5], 16
    $region37: #{tpu_custom_call.1} parent=1 // pred_fallthru
      _
    %v52 = vld [vmem:[%s0] sm:$0xff]
    %v53 = vld [vmem:[%s0 + $0x8] sm:$0xff]
    %v54 = vld [vmem:[#allocation2] sm:$0xff]
    %v55 = vld [vmem:[#allocation2 + $0x8] sm:$0xff]
    %v56 = vld [vmem:[%s2] sm:$0x1]
    %v58 = vlaneseq
    %v59 = vshrl.u32 %v58, 7
    %v60 = vsub.s32 0, %v59
    %v61 = vrot.slane %v56, %v60
    %vm63 = vcmask 130048
    %v65 = vsel %vm63, %v52, 0
    %v68 = vsel %vm63, %v53, 0
    %70 = vmatprep.subr.mxu0 0.0
    %71 = vmatpush1.msra.mxu0 0.0
    %72 = vmatprep.subr.mxu0 0.0
    %73 = vmatpush1.msra.mxu0 0.0
    %74 = vmatprep.subr.mxu0 0.0
    %75 = vmatpush1.msra.mxu0 0.0
    %76 = vmatprep.subr.mxu0 0.0
    %77 = vmatpush1.msra.mxu0 0.0
    %78 = vmatprep.subr.mxu0 0.0
    %79 = vmatpush1.msra.mxu0 0.0
    %80 = vmatprep.subr.mxu0 0.0
    %81 = vmatpush1.msra.mxu0 0.0
    %82 = vmatprep.subr.mxu0 0.0
    %83 = vmatpush1.msra.mxu0 0.0
    %84 = vmatprep.subr.mxu0 0.0
    %85 = vmatpush1.msra.mxu0 0.0
    %86 = vmatprep.subr.mxu0 0.0
    %87 = vmatpush1.msra.mxu0 0.0
    %88 = vmatprep.subr.mxu0 0.0
    %89 = vmatpush1.msra.mxu0 0.0
    %90 = vmatprep.subr.mxu0 0.0
    %91 = vmatpush1.msra.mxu0 0.0
    %92 = vmatprep.subr.mxu0 0.0
    %93 = vmatpush1.msra.mxu0 0.0
    %94 = vmatprep.subr.mxu0 0.0
    %95 = vmatpush1.msra.mxu0 0.0
    %96 = vmatprep.subr.mxu0 0.0
    %97 = vmatpush1.msra.mxu0 0.0
    %98 = vmatprep.subr.mxu0 0.0
    %99 = vmatpush1.msra.mxu0 %v55
    %100 = vmatprep.subr.mxu0 0.0
    %101 = vmatpush1.msra.mxu0 %v54
    %102 = vmatprep.subr.mxu0 0.0
    %103 = vmatpush2.msra.mxu0 0.0
    %104 = vmatprep.subr.mxu0 0.0
    %105 = vmatpush2.msra.mxu0 0.0
    %106 = vmatprep.subr.mxu0 0.0
    %107 = vmatpush2.msra.mxu0 0.0
    %108 = vmatprep.subr.mxu0 0.0
    %109 = vmatpush2.msra.mxu0 0.0
    %110 = vmatprep.subr.mxu0 0.0
    %111 = vmatpush2.msra.mxu0 0.0
    %112 = vmatprep.subr.mxu0 0.0
    %113 = vmatpush2.msra.mxu0 0.0
    %114 = vmatprep.subr.mxu0 0.0
    %115 = vmatpush2.msra.mxu0 0.0
    %116 = vmatprep.subr.mxu0 0.0
    %117 = vmatpush2.msra.mxu0 0.0
    %118 = vmatprep.subr.mxu0 0.0
    %119 = vmatpush2.msra.mxu0 0.0
    %120 = vmatprep.subr.mxu0 0.0
    %121 = vmatpush2.msra.mxu0 0.0
    %122 = vmatprep.subr.mxu0 0.0
    %123 = vmatpush2.msra.mxu0 0.0
    %124 = vmatprep.subr.mxu0 0.0
    %125 = vmatpush2.msra.mxu0 0.0
    %126 = vmatprep.subr.mxu0 0.0
    %127 = vmatpush2.msra.mxu0 0.0
    %128 = vmatprep.subr.mxu0 0.0
    %129 = vmatpush2.msra.mxu0 0.0
    %130 = vmatprep.subr.mxu0 0.0
    %131 = vmatpush2.msra.mxu0 0.0
    %132 = vmatprep.subr.mxu0 0.0
    %133 = vmatpush2.msra.mxu0 0.0
    %134 = vmatprep.mubr.f32.mxu0 0.0
    %135 = vmatmul.mubr.f32.gmra.mxu0 %v65
    %v136 = vpop.f32.mrf.mxu0
    %v137 = vadd.f32 %v61, %v136
    %v138 = vpop.f32.mrf.mxu0
    %139 = vmatprep.mubr.f32.mxu0 0.0
    %140 = vmatmul.mubr.f32.gmra.mxu0 %v68
    %v141 = vpop.f32.mrf.mxu0
    %v142 = vadd.f32 %v61, %v141
    %v143 = vpop.f32.mrf.mxu0
    %144 = vdwg.mxu0
    %v145 = vtanh.pop %v137
    %v146 = vtanh.pop %v142
    %v147 = vld [vmem:[%s3] sm:$0xff]
    %v148 = vld [vmem:[%s3 + $0x8] sm:$0xff]
    %v149 = vld [vmem:[%s3 + $0x10] sm:$0xff]
    %v150 = vld [vmem:[%s3 + $0x18] sm:$0xff]
    %v151 = vld [vmem:[#allocation4] sm:$0x1]
    %v153 = vlaneseq
    %v154 = vshrl.u32 %v153, 7
    %v155 = vsub.s32 0, %v154
    %v156 = vrot.slane %v151, %v155
    %vm158 = vcmask 261120
    %v160 = vsel %vm158, %v145, 0
    %v163 = vsel %vm158, %v146, 0
    %165 = vmatprep.subr.mxu0 0.0
    %166 = vmatpush1.msra.mxu0 0.0
    %167 = vmatprep.subr.mxu0 0.0
    %168 = vmatpush1.msra.mxu0 0.0
    %169 = vmatprep.subr.mxu0 0.0
    %170 = vmatpush1.msra.mxu0 0.0
    %171 = vmatprep.subr.mxu0 0.0
    %172 = vmatpush1.msra.mxu0 0.0
    %173 = vmatprep.subr.mxu0 0.0
    %174 = vmatpush1.msra.mxu0 0.0
    %175 = vmatprep.subr.mxu0 0.0
    %176 = vmatpush1.msra.mxu0 0.0
    %177 = vmatprep.subr.mxu0 0.0
    %178 = vmatpush1.msra.mxu0 0.0
    %179 = vmatprep.subr.mxu0 0.0
    %180 = vmatpush1.msra.mxu0 0.0
    %181 = vmatprep.subr.mxu0 0.0
    %182 = vmatpush1.msra.mxu0 0.0
    %183 = vmatprep.subr.mxu0 0.0
    %184 = vmatpush1.msra.mxu0 0.0
    %185 = vmatprep.subr.mxu0 0.0
    %186 = vmatpush1.msra.mxu0 0.0
    %187 = vmatprep.subr.mxu0 0.0
    %188 = vmatpush1.msra.mxu0 0.0
    %189 = vmatprep.subr.mxu0 0.0
    %190 = vmatpush1.msra.mxu0 %v150
    %191 = vmatprep.subr.mxu0 0.0
    %192 = vmatpush1.msra.mxu0 %v149
    %193 = vmatprep.subr.mxu0 0.0
    %194 = vmatpush1.msra.mxu0 %v148
    %195 = vmatprep.subr.mxu0 0.0
    %196 = vmatpush1.msra.mxu0 %v147
    %197 = vmatprep.subr.mxu0 0.0
    %198 = vmatpush2.msra.mxu0 0.0
    %199 = vmatprep.subr.mxu0 0.0
    %200 = vmatpush2.msra.mxu0 0.0
    %201 = vmatprep.subr.mxu0 0.0
    %202 = vmatpush2.msra.mxu0 0.0
    %203 = vmatprep.subr.mxu0 0.0
    %204 = vmatpush2.msra.mxu0 0.0
    %205 = vmatprep.subr.mxu0 0.0
    %206 = vmatpush2.msra.mxu0 0.0
    %207 = vmatprep.subr.mxu0 0.0
    %208 = vmatpush2.msra.mxu0 0.0
    %209 = vmatprep.subr.mxu0 0.0
    %210 = vmatpush2.msra.mxu0 0.0
    %211 = vmatprep.subr.mxu0 0.0
    %212 = vmatpush2.msra.mxu0 0.0
    %213 = vmatprep.subr.mxu0 0.0
    %214 = vmatpush2.msra.mxu0 0.0
    %215 = vmatprep.subr.mxu0 0.0
    %216 = vmatpush2.msra.mxu0 0.0
    %217 = vmatprep.subr.mxu0 0.0
    %218 = vmatpush2.msra.mxu0 0.0
    %219 = vmatprep.subr.mxu0 0.0
    %220 = vmatpush2.msra.mxu0 0.0
    %221 = vmatprep.subr.mxu0 0.0
    %222 = vmatpush2.msra.mxu0 0.0
    %223 = vmatprep.subr.mxu0 0.0
    %224 = vmatpush2.msra.mxu0 0.0
    %225 = vmatprep.subr.mxu0 0.0
    %226 = vmatpush2.msra.mxu0 0.0
    %227 = vmatprep.subr.mxu0 0.0
    %228 = vmatpush2.msra.mxu0 0.0
    %229 = vmatprep.mubr.f32.mxu0 0.0
    %230 = vmatmul.mubr.f32.gmra.mxu0 %v160
    %v231 = vpop.f32.mrf.mxu0
    %v232 = vadd.f32 %v156, %v231
    %v233 = vpop.f32.mrf.mxu0
    %234 = vmatprep.mubr.f32.mxu0 0.0
    %235 = vmatmul.mubr.f32.gmra.mxu0 %v163
    %v236 = vpop.f32.mrf.mxu0
    %v237 = vadd.f32 %v156, %v236
    %v238 = vpop.f32.mrf.mxu0
    %239 = vdwg.mxu0
    %v240 = vtanh.pop %v232
    %v241 = vtanh.pop %v237
    %v242 = vld [vmem:[%s5] sm:$0xff]
    %v243 = vld [vmem:[%s5 + $0x8] sm:$0xff]
    %v244 = vld [vmem:[%s5 + $0x10] sm:$0xff]
    %v245 = vld [vmem:[%s5 + $0x18] sm:$0xff]
    %v246 = vld [vmem:[%s6] sm:$0x1]
    %v248 = vlaneseq
    %v249 = vshrl.u32 %v248, 7
    %v250 = vsub.s32 0, %v249
    %v251 = vrot.slane %v246, %v250
    %v254 = vsel %vm158, %v240, 0
    %v257 = vsel %vm158, %v241, 0
    %259 = vmatprep.subr.mxu0 0.0
    %260 = vmatpush1.msra.mxu0 0.0
    %261 = vmatprep.subr.mxu0 0.0
    %262 = vmatpush1.msra.mxu0 0.0
    %263 = vmatprep.subr.mxu0 0.0
    %264 = vmatpush1.msra.mxu0 0.0
    %265 = vmatprep.subr.mxu0 0.0
    %266 = vmatpush1.msra.mxu0 0.0
    %267 = vmatprep.subr.mxu0 0.0
    %268 = vmatpush1.msra.mxu0 0.0
    %269 = vmatprep.subr.mxu0 0.0
    %270 = vmatpush1.msra.mxu0 0.0
    %271 = vmatprep.subr.mxu0 0.0
    %272 = vmatpush1.msra.mxu0 0.0
    %273 = vmatprep.subr.mxu0 0.0
    %274 = vmatpush1.msra.mxu0 0.0
    %275 = vmatprep.subr.mxu0 0.0
    %276 = vmatpush1.msra.mxu0 0.0
    %277 = vmatprep.subr.mxu0 0.0
    %278 = vmatpush1.msra.mxu0 0.0
    %279 = vmatprep.subr.mxu0 0.0
    %280 = vmatpush1.msra.mxu0 0.0
    %281 = vmatprep.subr.mxu0 0.0
    %282 = vmatpush1.msra.mxu0 0.0
    %283 = vmatprep.subr.mxu0 0.0
    %284 = vmatpush1.msra.mxu0 %v245
    %285 = vmatprep.subr.mxu0 0.0
    %286 = vmatpush1.msra.mxu0 %v244
    %287 = vmatprep.subr.mxu0 0.0
    %288 = vmatpush1.msra.mxu0 %v243
    %289 = vmatprep.subr.mxu0 0.0
    %290 = vmatpush1.msra.mxu0 %v242
    %291 = vmatprep.subr.mxu0 0.0
    %292 = vmatpush2.msra.mxu0 0.0
    %293 = vmatprep.subr.mxu0 0.0
    %294 = vmatpush2.msra.mxu0 0.0
    %295 = vmatprep.subr.mxu0 0.0
    %296 = vmatpush2.msra.mxu0 0.0
    %297 = vmatprep.subr.mxu0 0.0
    %298 = vmatpush2.msra.mxu0 0.0
    %299 = vmatprep.subr.mxu0 0.0
    %300 = vmatpush2.msra.mxu0 0.0
    %301 = vmatprep.subr.mxu0 0.0
    %302 = vmatpush2.msra.mxu0 0.0
    %303 = vmatprep.subr.mxu0 0.0
    %304 = vmatpush2.msra.mxu0 0.0
    %305 = vmatprep.subr.mxu0 0.0
    %306 = vmatpush2.msra.mxu0 0.0
    %307 = vmatprep.subr.mxu0 0.0
    %308 = vmatpush2.msra.mxu0 0.0
    %309 = vmatprep.subr.mxu0 0.0
    %310 = vmatpush2.msra.mxu0 0.0
    %311 = vmatprep.subr.mxu0 0.0
    %312 = vmatpush2.msra.mxu0 0.0
    %313 = vmatprep.subr.mxu0 0.0
    %314 = vmatpush2.msra.mxu0 0.0
    %315 = vmatprep.subr.mxu0 0.0
    %316 = vmatpush2.msra.mxu0 0.0
    %317 = vmatprep.subr.mxu0 0.0
    %318 = vmatpush2.msra.mxu0 0.0
    %319 = vmatprep.subr.mxu0 0.0
    %320 = vmatpush2.msra.mxu0 0.0
    %321 = vmatprep.subr.mxu0 0.0
    %322 = vmatpush2.msra.mxu0 0.0
    %323 = vmatprep.mubr.f32.mxu0 0.0
    %324 = vmatmul.mubr.f32.gmra.mxu0 %v254
    %v325 = vpop.f32.mrf.mxu0
    %v326 = vadd.f32 %v251, %v325
    %v327 = vpop.f32.mrf.mxu0
    %328 = vmatprep.mubr.f32.mxu0 0.0
    %329 = vmatmul.mubr.f32.gmra.mxu0 %v257
    %v330 = vpop.f32.mrf.mxu0
    %v331 = vadd.f32 %v251, %v330
    %v332 = vpop.f32.mrf.mxu0
    %333 = vdwg.mxu0
    %vm334 = vcmask 31744
    %335 = vst.msk [vmem:[#allocation6] sm:$0xff] %vm334, %v326
    %336 = vst.msk [vmem:[#allocation6 + $0x8] sm:$0xff] %vm334, %v331
    // Predicated region
    $region38: #{tpu_custom_call.1} parent=1 // pred_check
      _
    $region39: #{tpu_custom_call.1} parent=1 // pred_check_branch
      %338 = sbr.rel (0) target = $region41
    $region40: #{tpu_custom_call.1} parent=1 // pred_region
      // Predicated region
      $region42: #{tpu_custom_call.1} parent=40 // pred_check
        _
      $region43: #{tpu_custom_call.1} parent=40 // pred_check_branch
        %340 = sbr.rel (0) target = $region45
      $region44: #{tpu_custom_call.1} parent=40 // pred_region
        // Predicated region
        $region46: #{tpu_custom_call.1} parent=44 // pred_check
          _
        $region47: #{tpu_custom_call.1} parent=44 // pred_check_branch
          %342 = sbr.rel (0) target = $region49
        $region48: #{tpu_custom_call.1} parent=44 // pred_region
          // Predicated region
          $region61: #{tpu_custom_call.1} parent=48 // pred_check
            _
          $region62: #{tpu_custom_call.1} parent=48 // pred_check_branch
            %358 = sbr.rel (0) target = $region64
          $region63: #{tpu_custom_call.1} parent=48 // pred_region
            loop: start=0, step=1, limit=1
            $region65: #{tpu_custom_call.1} parent=63 // loop_pre_header
              _
            $region66: #{tpu_custom_call.1} parent=63 // loop_header
              %s360 = sphi 0, %s364
              %p361 = scmp.ge.s32.totalorder %s360, 1
              %s365 = sphi [#allocation6], [#allocation6]
              %s366 = sphi %s7, %s7
            $region67: #{tpu_custom_call.1} parent=63 // loop_header_branch
              %363 = sbr.rel (%p361) target = $region71
            $region68: #{tpu_custom_call.1} parent=63 // loop_body
              %v367 = vld [vmem:[%s365] sm:$0xff]
              %368 = vst [vmem:[%s366] sm:$0xff] %v367
            $region69: #{tpu_custom_call.1} parent=63 // loop_footer
              %s364 = sadd.s32 1, %s360
            $region70: #{tpu_custom_call.1} parent=63 // loop_footer_branch
              %359 = sbr.rel target = $region66
            $region71: #{tpu_custom_call.1} parent=63 // loop_exit
              _
          $region64: #{tpu_custom_call.1} parent=48 // pred_fallthru
            _
          // Predicated region
          $region72: #{tpu_custom_call.1} parent=48 // pred_check
            _
          $region73: #{tpu_custom_call.1} parent=48 // pred_check_branch
            %370 = sbr.rel target = $region75
          $region74: #{tpu_custom_call.1} parent=48 // pred_region
            _
          $region75: #{tpu_custom_call.1} parent=48 // pred_fallthru
            _
        $region49: #{tpu_custom_call.1} parent=44 // pred_fallthru
          _
        // Predicated region
        $region50: #{tpu_custom_call.1} parent=44 // pred_check
          _
        $region51: #{tpu_custom_call.1} parent=44 // pred_check_branch
          %344 = sbr.rel target = $region53
        $region52: #{tpu_custom_call.1} parent=44 // pred_region
          %s346 = ssub.s32 256, 1
          loop: start=0, step=1, limit=1
          $region54: #{tpu_custom_call.1} parent=52 // loop_pre_header
            _
          $region55: #{tpu_custom_call.1} parent=52 // loop_header
            %s348 = sphi 0, %s352
            %p349 = scmp.ge.s32.totalorder %s348, 1
            %s353 = sphi [#allocation6], [#allocation6]
            %s354 = sphi %s7, %s7
          $region56: #{tpu_custom_call.1} parent=52 // loop_header_branch
            %351 = sbr.rel (%p349) target = $region60
          $region57: #{tpu_custom_call.1} parent=52 // loop_body
            %v355 = vld [vmem:[%s353] sm:%s346]
            %356 = vst [vmem:[%s354] sm:%s346] %v355
          $region58: #{tpu_custom_call.1} parent=52 // loop_footer
            %s352 = sadd.s32 1, %s348
          $region59: #{tpu_custom_call.1} parent=52 // loop_footer_branch
            %347 = sbr.rel target = $region55
          $region60: #{tpu_custom_call.1} parent=52 // loop_exit
            _
        $region53: #{tpu_custom_call.1} parent=44 // pred_fallthru
          _
      $region45: #{tpu_custom_call.1} parent=40 // pred_fallthru
        _
      %371 = vnop
    $region41: #{tpu_custom_call.1} parent=1 // pred_fallthru
      _
    // Predicated region
    $region76: #{tpu_custom_call.1} parent=1 // pred_check
      _
    $region77: #{tpu_custom_call.1} parent=1 // pred_check_branch
      %373 = sbr.rel (0) target = $region79
    $region78: #{tpu_custom_call.1} parent=1 // pred_region
      _
    $region79: #{tpu_custom_call.1} parent=1 // pred_fallthru
      _
    %374 = vsyncpa [#allocation3], 1
    %375 = vsyncpa [#allocation5], 1

// kernel: tpu_custom_call.1
$region0: #{tpu_custom_call.1}
  #allocation0 [shape = 'u32[]', space=smem, size = 0x4, offset = 0x4, fixed_abs, tag = 'smem constant byte address 0x4 - core index']
  #allocation1 [shape = 'u32[144,128]{1,0:T(1,128)}', space=vmem, size = 0x12000, scoped, tag = 'internal scratch']
  %s0 = inlined_call_operand.vmem [shape: f32[8,16], index: 0, kind: input, shape index: {}]
  %s1 = inlined_call_operand.hbm [shape: f32[16,32], index: 1, kind: input, shape index: {}]
  %s2 = inlined_call_operand.vmem [shape: f32[1,32], index: 2, kind: input, shape index: {}]
  %s3 = inlined_call_operand.vmem [shape: f32[32,32], index: 3, kind: input, shape index: {}]
  %s4 = inlined_call_operand.hbm [shape: f32[1,32], index: 4, kind: input, shape index: {}]
  %s5 = inlined_call_operand.vmem [shape: f32[32,4], index: 5, kind: input, shape index: {}]
  %s6 = inlined_call_operand.vmem [shape: f32[1,4], index: 6, kind: input, shape index: {}]
  %s7 = inlined_call_operand.vmem [shape: f32[8,4], index: 7, kind: output, shape index: {}]
  %s8 = sld [smem:[#allocation0]]
  $region80: #{tpu_custom_call.1} parent=0
    _
  %s10 = ssub.s32 1, %s8
  %s11 = scalar_select 0, %s10, %s8
  $region1: #{tpu_custom_call.1} parent=0
    #allocation2 [shape = 'u8[8192]{0}', space=vmem, size = 0x2000, scoped, tag = 'input window, operand 1, single buffered']
    #allocation3 [shape = 's32[1]{0}', space=sflag, size = 0x4, scoped, tag = 'scoped memory for tpu_custom_call.1']
    #allocation4 [shape = 'u8[512]{0}', space=vmem, size = 0x400, scoped, tag = 'input window, operand 4, single buffered']
    #allocation5 [shape = 's32[1]{0}', space=sflag, size = 0x4, scoped, tag = 'scoped memory for tpu_custom_call.1']
    #allocation6 [shape = 'u8[8192]{0}', space=vmem, size = 0x2000, scoped, tag = 'output window, operand 0, single buffered']
    %12 = vsyncpa [#allocation3], 0
    %13 = vsyncpa [#allocation5], 0
    // Predicated region
    $region2: #{tpu_custom_call.1} parent=1 // pred_check
      _
    $region3: #{tpu_custom_call.1} parent=1 // pred_check_branch
      %15 = sbr.rel (0) target = $region5
    $region4: #{tpu_custom_call.1} parent=1 // pred_region
      _
    $region5: #{tpu_custom_call.1} parent=1 // pred_fallthru
      _
    // Predicated region
    $region6: #{tpu_custom_call.1} parent=1 // pred_check
      _
    $region7: #{tpu_custom_call.1} parent=1 // pred_check_branch
      %17 = sbr.rel (0) target = $region9
    $region8: #{tpu_custom_call.1} parent=1 // pred_region
      %s19 = ssub.s32 256, 256
      %20 = vsyncadd [#allocation3], %s19
      %s21 = sshll.u32 [#allocation2], 4
      %s22 = int_to_ptr.vmem [resolvable:$true] %s21
      %27 = dma.hbm_to_vmem [thread:$0]  %s1, 256, %s22, [#allocation3], 128, 128, 8
    $region9: #{tpu_custom_call.1} parent=1 // pred_fallthru
      _
    // Predicated region
    $region10: #{tpu_custom_call.1} parent=1 // pred_check
      _
    $region11: #{tpu_custom_call.1} parent=1 // pred_check_branch
      %29 = sbr.rel (0) target = $region13
    $region12: #{tpu_custom_call.1} parent=1 // pred_region
      _
    $region13: #{tpu_custom_call.1} parent=1 // pred_fallthru
      _
    // Predicated region
    $region14: #{tpu_custom_call.1} parent=1 // pred_check
      _
    $region15: #{tpu_custom_call.1} parent=1 // pred_check_branch
      %31 = sbr.rel (0) target = $region17
    $region16: #{tpu_custom_call.1} parent=1 // pred_region
      _
    $region17: #{tpu_custom_call.1} parent=1 // pred_fallthru
      _
    // Predicated region
    $region18: #{tpu_custom_call.1} parent=1 // pred_check
      _
    $region19: #{tpu_custom_call.1} parent=1 // pred_check_branch
      %33 = sbr.rel (0) target = $region21
    $region20: #{tpu_custom_call.1} parent=1 // pred_region
      %s35 = ssub.s32 16, 16
      %36 = vsyncadd [#allocation5], %s35
      %s38 = sshll.u32 [#allocation4], 4
      %s39 = int_to_ptr.vmem [resolvable:$true] %s38
      %41 = dma.hbm_to_vmem [thread:$0]  %s4, 16, %s39, [#allocation5]
    $region21: #{tpu_custom_call.1} parent=1 // pred_fallthru
      _
    // Predicated region
    $region22: #{tpu_custom_call.1} parent=1 // pred_check
      _
    $region23: #{tpu_custom_call.1} parent=1 // pred_check_branch
      %43 = sbr.rel (0) target = $region25
    $region24: #{tpu_custom_call.1} parent=1 // pred_region
      _
    $region25: #{tpu_custom_call.1} parent=1 // pred_fallthru
      _
    // Predicated region
    $region26: #{tpu_custom_call.1} parent=1 // pred_check
      _
    $region27: #{tpu_custom_call.1} parent=1 // pred_check_branch
      %45 = sbr.rel (0) target = $region29
    $region28: #{tpu_custom_call.1} parent=1 // pred_region
      _
    $region29: #{tpu_custom_call.1} parent=1 // pred_fallthru
      _
    // Predicated region
    $region30: #{tpu_custom_call.1} parent=1 // pred_check
      _
    $region31: #{tpu_custom_call.1} parent=1 // pred_check_branch
      %47 = sbr.rel (0) target = $region33
    $region32: #{tpu_custom_call.1} parent=1 // pred_region
      %48 = dma.done [#allocation3], 256
    $region33: #{tpu_custom_call.1} parent=1 // pred_fallthru
      _
    // Predicated region
    $region34: #{tpu_custom_call.1} parent=1 // pred_check
      _
    $region35: #{tpu_custom_call.1} parent=1 // pred_check_branch
      %50 = sbr.rel (0) target = $region37
    $region36: #{tpu_custom_call.1} parent=1 // pred_region
      %51 = dma.done [#allocation5], 16
    $region37: #{tpu_custom_call.1} parent=1 // pred_fallthru
      _
    %v52 = vld [vmem:[%s0] sm:$0xff]
    %v53 = vld [vmem:[%s0 + $0x8] sm:$0xff]
    %v54 = vld [vmem:[#allocation2] sm:$0xff]
    %v55 = vld [vmem:[#allocation2 + $0x8] sm:$0xff]
    %v56 = vld [vmem:[%s2] sm:$0x1]
    %v58 = vlaneseq
    %v59 = vshrl.u32 %v58, 7
    %v60 = vsub.s32 0, %v59
    %v61 = vrot.slane %v56, %v60
    %vm63 = vcmask 130048
    %v65 = vsel %vm63, %v52, 0
    %v68 = vsel %vm63, %v53, 0
    %70 = vmatprep.subr.mxu0 0.0
    %71 = vmatpush1.msra.mxu0 0.0
    %72 = vmatprep.subr.mxu0 0.0
    %73 = vmatpush1.msra.mxu0 0.0
    %74 = vmatprep.subr.mxu0 0.0
    %75 = vmatpush1.msra.mxu0 0.0
    %76 = vmatprep.subr.mxu0 0.0
    %77 = vmatpush1.msra.mxu0 0.0
    %78 = vmatprep.subr.mxu0 0.0
    %79 = vmatpush1.msra.mxu0 0.0
    %80 = vmatprep.subr.mxu0 0.0
    %81 = vmatpush1.msra.mxu0 0.0
    %82 = vmatprep.subr.mxu0 0.0
    %83 = vmatpush1.msra.mxu0 0.0
    %84 = vmatprep.subr.mxu0 0.0
    %85 = vmatpush1.msra.mxu0 0.0
    %86 = vmatprep.subr.mxu0 0.0
    %87 = vmatpush1.msra.mxu0 0.0
    %88 = vmatprep.subr.mxu0 0.0
    %89 = vmatpush1.msra.mxu0 0.0
    %90 = vmatprep.subr.mxu0 0.0
    %91 = vmatpush1.msra.mxu0 0.0
    %92 = vmatprep.subr.mxu0 0.0
    %93 = vmatpush1.msra.mxu0 0.0
    %94 = vmatprep.subr.mxu0 0.0
    %95 = vmatpush1.msra.mxu0 0.0
    %96 = vmatprep.subr.mxu0 0.0
    %97 = vmatpush1.msra.mxu0 0.0
    %98 = vmatprep.subr.mxu0 0.0
    %99 = vmatpush1.msra.mxu0 %v55
    %100 = vmatprep.subr.mxu0 0.0
    %101 = vmatpush1.msra.mxu0 %v54
    %102 = vmatprep.subr.mxu0 0.0
    %103 = vmatpush2.msra.mxu0 0.0
    %104 = vmatprep.subr.mxu0 0.0
    %105 = vmatpush2.msra.mxu0 0.0
    %106 = vmatprep.subr.mxu0 0.0
    %107 = vmatpush2.msra.mxu0 0.0
    %108 = vmatprep.subr.mxu0 0.0
    %109 = vmatpush2.msra.mxu0 0.0
    %110 = vmatprep.subr.mxu0 0.0
    %111 = vmatpush2.msra.mxu0 0.0
    %112 = vmatprep.subr.mxu0 0.0
    %113 = vmatpush2.msra.mxu0 0.0
    %114 = vmatprep.subr.mxu0 0.0
    %115 = vmatpush2.msra.mxu0 0.0
    %116 = vmatprep.subr.mxu0 0.0
    %117 = vmatpush2.msra.mxu0 0.0
    %118 = vmatprep.subr.mxu0 0.0
    %119 = vmatpush2.msra.mxu0 0.0
    %120 = vmatprep.subr.mxu0 0.0
    %121 = vmatpush2.msra.mxu0 0.0
    %122 = vmatprep.subr.mxu0 0.0
    %123 = vmatpush2.msra.mxu0 0.0
    %124 = vmatprep.subr.mxu0 0.0
    %125 = vmatpush2.msra.mxu0 0.0
    %126 = vmatprep.subr.mxu0 0.0
    %127 = vmatpush2.msra.mxu0 0.0
    %128 = vmatprep.subr.mxu0 0.0
    %129 = vmatpush2.msra.mxu0 0.0
    %130 = vmatprep.subr.mxu0 0.0
    %131 = vmatpush2.msra.mxu0 0.0
    %132 = vmatprep.subr.mxu0 0.0
    %133 = vmatpush2.msra.mxu0 0.0
    %134 = vmatprep.mubr.f32.mxu0 0.0
    %135 = vmatmul.mubr.f32.gmra.mxu0 %v65
    %v136 = vpop.f32.mrf.mxu0
    %v137 = vadd.f32 %v61, %v136
    %v138 = vpop.f32.mrf.mxu0
    %139 = vmatprep.mubr.f32.mxu0 0.0
    %140 = vmatmul.mubr.f32.gmra.mxu0 %v68
    %v141 = vpop.f32.mrf.mxu0
    %v142 = vadd.f32 %v61, %v141
    %v143 = vpop.f32.mrf.mxu0
    %144 = vdwg.mxu0
    %v145 = vtanh.pop %v137
    %v146 = vtanh.pop %v142
    %v147 = vld [vmem:[%s3] sm:$0xff]
    %v148 = vld [vmem:[%s3 + $0x8] sm:$0xff]
    %v149 = vld [vmem:[%s3 + $0x10] sm:$0xff]
    %v150 = vld [vmem:[%s3 + $0x18] sm:$0xff]
    %v151 = vld [vmem:[#allocation4] sm:$0x1]
    %v153 = vlaneseq
    %v154 = vshrl.u32 %v153, 7
    %v155 = vsub.s32 0, %v154
    %v156 = vrot.slane %v151, %v155
    %vm158 = vcmask 261120
    %v160 = vsel %vm158, %v145, 0
    %v163 = vsel %vm158, %v146, 0
    %165 = vmatprep.subr.mxu0 0.0
    %166 = vmatpush1.msra.mxu0 0.0
    %167 = vmatprep.subr.mxu0 0.0
    %168 = vmatpush1.msra.mxu0 0.0
    %169 = vmatprep.subr.mxu0 0.0
    %170 = vmatpush1.msra.mxu0 0.0
    %171 = vmatprep.subr.mxu0 0.0
    %172 = vmatpush1.msra.mxu0 0.0
    %173 = vmatprep.subr.mxu0 0.0
    %174 = vmatpush1.msra.mxu0 0.0
    %175 = vmatprep.subr.mxu0 0.0
    %176 = vmatpush1.msra.mxu0 0.0
    %177 = vmatprep.subr.mxu0 0.0
    %178 = vmatpush1.msra.mxu0 0.0
    %179 = vmatprep.subr.mxu0 0.0
    %180 = vmatpush1.msra.mxu0 0.0
    %181 = vmatprep.subr.mxu0 0.0
    %182 = vmatpush1.msra.mxu0 0.0
    %183 = vmatprep.subr.mxu0 0.0
    %184 = vmatpush1.msra.mxu0 0.0
    %185 = vmatprep.subr.mxu0 0.0
    %186 = vmatpush1.msra.mxu0 0.0
    %187 = vmatprep.subr.mxu0 0.0
    %188 = vmatpush1.msra.mxu0 0.0
    %189 = vmatprep.subr.mxu0 0.0
    %190 = vmatpush1.msra.mxu0 %v150
    %191 = vmatprep.subr.mxu0 0.0
    %192 = vmatpush1.msra.mxu0 %v149
    %193 = vmatprep.subr.mxu0 0.0
    %194 = vmatpush1.msra.mxu0 %v148
    %195 = vmatprep.subr.mxu0 0.0
    %196 = vmatpush1.msra.mxu0 %v147
    %197 = vmatprep.subr.mxu0 0.0
    %198 = vmatpush2.msra.mxu0 0.0
    %199 = vmatprep.subr.mxu0 0.0
    %200 = vmatpush2.msra.mxu0 0.0
    %201 = vmatprep.subr.mxu0 0.0
    %202 = vmatpush2.msra.mxu0 0.0
    %203 = vmatprep.subr.mxu0 0.0
    %204 = vmatpush2.msra.mxu0 0.0
    %205 = vmatprep.subr.mxu0 0.0
    %206 = vmatpush2.msra.mxu0 0.0
    %207 = vmatprep.subr.mxu0 0.0
    %208 = vmatpush2.msra.mxu0 0.0
    %209 = vmatprep.subr.mxu0 0.0
    %210 = vmatpush2.msra.mxu0 0.0
    %211 = vmatprep.subr.mxu0 0.0
    %212 = vmatpush2.msra.mxu0 0.0
    %213 = vmatprep.subr.mxu0 0.0
    %214 = vmatpush2.msra.mxu0 0.0
    %215 = vmatprep.subr.mxu0 0.0
    %216 = vmatpush2.msra.mxu0 0.0
    %217 = vmatprep.subr.mxu0 0.0
    %218 = vmatpush2.msra.mxu0 0.0
    %219 = vmatprep.subr.mxu0 0.0
    %220 = vmatpush2.msra.mxu0 0.0
    %221 = vmatprep.subr.mxu0 0.0
    %222 = vmatpush2.msra.mxu0 0.0
    %223 = vmatprep.subr.mxu0 0.0
    %224 = vmatpush2.msra.mxu0 0.0
    %225 = vmatprep.subr.mxu0 0.0
    %226 = vmatpush2.msra.mxu0 0.0
    %227 = vmatprep.subr.mxu0 0.0
    %228 = vmatpush2.msra.mxu0 0.0
    %229 = vmatprep.mubr.f32.mxu0 0.0
    %230 = vmatmul.mubr.f32.gmra.mxu0 %v160
    %v231 = vpop.f32.mrf.mxu0
    %v232 = vadd.f32 %v156, %v231
    %v233 = vpop.f32.mrf.mxu0
    %234 = vmatprep.mubr.f32.mxu0 0.0
    %235 = vmatmul.mubr.f32.gmra.mxu0 %v163
    %v236 = vpop.f32.mrf.mxu0
    %v237 = vadd.f32 %v156, %v236
    %v238 = vpop.f32.mrf.mxu0
    %239 = vdwg.mxu0
    %v240 = vtanh.pop %v232
    %v241 = vtanh.pop %v237
    %v242 = vld [vmem:[%s5] sm:$0xff]
    %v243 = vld [vmem:[%s5 + $0x8] sm:$0xff]
    %v244 = vld [vmem:[%s5 + $0x10] sm:$0xff]
    %v245 = vld [vmem:[%s5 + $0x18] sm:$0xff]
    %v246 = vld [vmem:[%s6] sm:$0x1]
    %v248 = vlaneseq
    %v249 = vshrl.u32 %v248, 7
    %v250 = vsub.s32 0, %v249
    %v251 = vrot.slane %v246, %v250
    %v254 = vsel %vm158, %v240, 0
    %v257 = vsel %vm158, %v241, 0
    %259 = vmatprep.subr.mxu0 0.0
    %260 = vmatpush1.msra.mxu0 0.0
    %261 = vmatprep.subr.mxu0 0.0
    %262 = vmatpush1.msra.mxu0 0.0
    %263 = vmatprep.subr.mxu0 0.0
    %264 = vmatpush1.msra.mxu0 0.0
    %265 = vmatprep.subr.mxu0 0.0
    %266 = vmatpush1.msra.mxu0 0.0
    %267 = vmatprep.subr.mxu0 0.0
    %268 = vmatpush1.msra.mxu0 0.0
    %269 = vmatprep.subr.mxu0 0.0
    %270 = vmatpush1.msra.mxu0 0.0
    %271 = vmatprep.subr.mxu0 0.0
    %272 = vmatpush1.msra.mxu0 0.0
    %273 = vmatprep.subr.mxu0 0.0
    %274 = vmatpush1.msra.mxu0 0.0
    %275 = vmatprep.subr.mxu0 0.0
    %276 = vmatpush1.msra.mxu0 0.0
    %277 = vmatprep.subr.mxu0 0.0
    %278 = vmatpush1.msra.mxu0 0.0
    %279 = vmatprep.subr.mxu0 0.0
    %280 = vmatpush1.msra.mxu0 0.0
    %281 = vmatprep.subr.mxu0 0.0
    %282 = vmatpush1.msra.mxu0 0.0
    %283 = vmatprep.subr.mxu0 0.0
    %284 = vmatpush1.msra.mxu0 %v245
    %285 = vmatprep.subr.mxu0 0.0
    %286 = vmatpush1.msra.mxu0 %v244
    %287 = vmatprep.subr.mxu0 0.0
    %288 = vmatpush1.msra.mxu0 %v243
    %289 = vmatprep.subr.mxu0 0.0
    %290 = vmatpush1.msra.mxu0 %v242
    %291 = vmatprep.subr.mxu0 0.0
    %292 = vmatpush2.msra.mxu0 0.0
    %293 = vmatprep.subr.mxu0 0.0
    %294 = vmatpush2.msra.mxu0 0.0
    %295 = vmatprep.subr.mxu0 0.0
    %296 = vmatpush2.msra.mxu0 0.0
    %297 = vmatprep.subr.mxu0 0.0
    %298 = vmatpush2.msra.mxu0 0.0
    %299 = vmatprep.subr.mxu0 0.0
    %300 = vmatpush2.msra.mxu0 0.0
    %301 = vmatprep.subr.mxu0 0.0
    %302 = vmatpush2.msra.mxu0 0.0
    %303 = vmatprep.subr.mxu0 0.0
    %304 = vmatpush2.msra.mxu0 0.0
    %305 = vmatprep.subr.mxu0 0.0
    %306 = vmatpush2.msra.mxu0 0.0
    %307 = vmatprep.subr.mxu0 0.0
    %308 = vmatpush2.msra.mxu0 0.0
    %309 = vmatprep.subr.mxu0 0.0
    %310 = vmatpush2.msra.mxu0 0.0
    %311 = vmatprep.subr.mxu0 0.0
    %312 = vmatpush2.msra.mxu0 0.0
    %313 = vmatprep.subr.mxu0 0.0
    %314 = vmatpush2.msra.mxu0 0.0
    %315 = vmatprep.subr.mxu0 0.0
    %316 = vmatpush2.msra.mxu0 0.0
    %317 = vmatprep.subr.mxu0 0.0
    %318 = vmatpush2.msra.mxu0 0.0
    %319 = vmatprep.subr.mxu0 0.0
    %320 = vmatpush2.msra.mxu0 0.0
    %321 = vmatprep.subr.mxu0 0.0
    %322 = vmatpush2.msra.mxu0 0.0
    %323 = vmatprep.mubr.f32.mxu0 0.0
    %324 = vmatmul.mubr.f32.gmra.mxu0 %v254
    %v325 = vpop.f32.mrf.mxu0
    %v326 = vadd.f32 %v251, %v325
    %v327 = vpop.f32.mrf.mxu0
    %328 = vmatprep.mubr.f32.mxu0 0.0
    %329 = vmatmul.mubr.f32.gmra.mxu0 %v257
    %v330 = vpop.f32.mrf.mxu0
    %v331 = vadd.f32 %v251, %v330
    %v332 = vpop.f32.mrf.mxu0
    %333 = vdwg.mxu0
    %vm334 = vcmask 31744
    %335 = vst.msk [vmem:[#allocation6] sm:$0xff] %vm334, %v326
    %336 = vst.msk [vmem:[#allocation6 + $0x8] sm:$0xff] %vm334, %v331
    // Predicated region
    $region38: #{tpu_custom_call.1} parent=1 // pred_check
      _
    $region39: #{tpu_custom_call.1} parent=1 // pred_check_branch
      %338 = sbr.rel (0) target = $region41
    $region40: #{tpu_custom_call.1} parent=1 // pred_region
      // Predicated region
      $region42: #{tpu_custom_call.1} parent=40 // pred_check
        _
      $region43: #{tpu_custom_call.1} parent=40 // pred_check_branch
        %340 = sbr.rel (0) target = $region45
      $region44: #{tpu_custom_call.1} parent=40 // pred_region
        // Predicated region
        $region46: #{tpu_custom_call.1} parent=44 // pred_check
          _
        $region47: #{tpu_custom_call.1} parent=44 // pred_check_branch
          %342 = sbr.rel (0) target = $region49
        $region48: #{tpu_custom_call.1} parent=44 // pred_region
          // Predicated region
          $region61: #{tpu_custom_call.1} parent=48 // pred_check
            _
          $region62: #{tpu_custom_call.1} parent=48 // pred_check_branch
            %358 = sbr.rel (0) target = $region64
          $region63: #{tpu_custom_call.1} parent=48 // pred_region
            loop: start=0, step=1, limit=1
            $region65: #{tpu_custom_call.1} parent=63 // loop_pre_header
              _
            $region66: #{tpu_custom_call.1} parent=63 // loop_header
              %s360 = sphi 0, %s364
              %p361 = scmp.ge.s32.totalorder %s360, 1
              %s365 = sphi [#allocation6], [#allocation6]
              %s366 = sphi %s7, %s7
            $region67: #{tpu_custom_call.1} parent=63 // loop_header_branch
              %363 = sbr.rel (%p361) target = $region71
            $region68: #{tpu_custom_call.1} parent=63 // loop_body
              %v367 = vld [vmem:[%s365] sm:$0xff]
              %368 = vst [vmem:[%s366] sm:$0xff] %v367
            $region69: #{tpu_custom_call.1} parent=63 // loop_footer
              %s364 = sadd.s32 1, %s360
            $region70: #{tpu_custom_call.1} parent=63 // loop_footer_branch
              %359 = sbr.rel target = $region66
            $region71: #{tpu_custom_call.1} parent=63 // loop_exit
              _
          $region64: #{tpu_custom_call.1} parent=48 // pred_fallthru
            _
          // Predicated region
          $region72: #{tpu_custom_call.1} parent=48 // pred_check
            _
          $region73: #{tpu_custom_call.1} parent=48 // pred_check_branch
            %370 = sbr.rel target = $region75
          $region74: #{tpu_custom_call.1} parent=48 // pred_region
            _
          $region75: #{tpu_custom_call.1} parent=48 // pred_fallthru
            _
        $region49: #{tpu_custom_call.1} parent=44 // pred_fallthru
          _
        // Predicated region
        $region50: #{tpu_custom_call.1} parent=44 // pred_check
          _
        $region51: #{tpu_custom_call.1} parent=44 // pred_check_branch
          %344 = sbr.rel target = $region53
        $region52: #{tpu_custom_call.1} parent=44 // pred_region
          %s346 = ssub.s32 256, 1
          loop: start=0, step=1, limit=1
          $region54: #{tpu_custom_call.1} parent=52 // loop_pre_header
            _
          $region55: #{tpu_custom_call.1} parent=52 // loop_header
            %s348 = sphi 0, %s352
            %p349 = scmp.ge.s32.totalorder %s348, 1
            %s353 = sphi [#allocation6], [#allocation6]
            %s354 = sphi %s7, %s7
          $region56: #{tpu_custom_call.1} parent=52 // loop_header_branch
            %351 = sbr.rel (%p349) target = $region60
          $region57: #{tpu_custom_call.1} parent=52 // loop_body
            %v355 = vld [vmem:[%s353] sm:%s346]
            %356 = vst [vmem:[%s354] sm:%s346] %v355
          $region58: #{tpu_custom_call.1} parent=52 // loop_footer
            %s352 = sadd.s32 1, %s348
          $region59: #{tpu_custom_call.1} parent=52 // loop_footer_branch
            %347 = sbr.rel target = $region55
          $region60: #{tpu_custom_call.1} parent=52 // loop_exit
            _
        $region53: #{tpu_custom_call.1} parent=44 // pred_fallthru
          _
      $region45: #{tpu_custom_call.1} parent=40 // pred_fallthru
        _
      %371 = vnop
    $region41: #{tpu_custom_call.1} parent=1 // pred_fallthru
      _
    // Predicated region
    $region76: #{tpu_custom_call.1} parent=1 // pred_check
      _
    $region77: #{tpu_custom_call.1} parent=1 // pred_check_branch
      %373 = sbr.rel (0) target = $region79
    $region78: #{tpu_custom_call.1} parent=1 // pred_region
      _
    $region79: #{tpu_custom_call.1} parent=1 // pred_fallthru
      _
    %374 = vsyncpa [#allocation3], 1
    %375 = vsyncpa [#allocation5], 1

</llo_original>
